<compile_context>
chip_gen: v7x
topology: tpu7x:2x2x1
jax: 0.10.0
libtpu: 0.0.40
codegen_flags: <defaults>
</compile_context>

<pallas_src>
import jax
import jax.numpy as jnp
from jax.experimental import pallas as pl
from jax.experimental.pallas import tpu as pltpu

_LANE = 128


def _tpu_generation():
    kind = ""
    try:
        kind = jax.devices()[0].device_kind.lower()
    except Exception:
        pass
    if "v7" in kind or "7x" in kind:
        return "v7"
    if "v6" in kind:
        return "v6"
    if "v5" in kind:
        return "v5"
    return "other"


# Bytes of one DMA tile per generation (in+out double-buffered => 4x this in VMEM).
_MAX_BLOCK_BYTES = {
    "v5": 2 << 20,    # 8 MiB buffered, well under v5e's 16 MiB default scoped VMEM
    "v6": 4 << 20,    # 16 MiB buffered
    "v7": 8 << 20,    # 32 MiB buffered per TC, under v7x's 64 MiB physical VMEM
    "other": 2 << 20, # conservative default
}


# ----------------------------------------------------------------------------
# Kernel: elementwise exp(t * ln_base) * scale + offset*scale over one tile.
# Scalar parameters live in SMEM: params = [ln_base, scale, offset*scale].
# ----------------------------------------------------------------------------
def _pure_exp_kernel(params_ref, t_ref, o_ref):
    ln_base = params_ref[0]
    scale = params_ref[1]
    offset_scaled = params_ref[2]
    # Load in native dtype, compute in f32 (narrow HBM traffic for bf16 inputs,
    # no bf16 VPU/EUP dependence -> same code path on v5e/v6e/v7x).
    t = t_ref[...].astype(jnp.float32)
    out = jnp.exp(t * ln_base) * scale + offset_scaled  # == (base**t + offset) * scale
    o_ref[...] = out.astype(o_ref.dtype)


def _run_slab(t2d, params, *, block_rows, vmem_limit_bytes, use_two_cores):
    """Run the elementwise kernel over a 2-D slab [rows, cols], tiled by rows."""
    rows, cols = t2d.shape
    n_blocks = pl.cdiv(rows, block_rows)
    nelem = rows * cols
    itemsize = t2d.dtype.itemsize
    cost = pl.CostEstimate(
        flops=3 * nelem,            # mul, mul, add per element
        transcendentals=nelem,      # one exp per element
        bytes_accessed=2 * nelem * itemsize,
    )
    params_spec = pl.BlockSpec(memory_space=pltpu.SMEM)  # scalars

    if use_two_cores and n_blocks >= 2 and n_blocks % 2 == 0:
        # v7x: explicit per-TensorCore split of the row-block range.
        per_core = n_blocks // 2
        grid = (2, per_core)
        tile = pl.BlockSpec((block_rows, cols), lambda c, j: (c * per_core + j, 0))
        dims = (pltpu.CORE_PARALLEL, pltpu.ARBITRARY)
    else:
        grid = (n_blocks,)
        tile = pl.BlockSpec((block_rows, cols), lambda i: (i, 0))
        dims = ("parallel",)

    return pl.pallas_call(
        _pure_exp_kernel,
        out_shape=jax.ShapeDtypeStruct((rows, cols), t2d.dtype),
        grid=grid,
        in_specs=[params_spec, tile],
        out_specs=tile,
        compiler_params=pltpu.CompilerParams(
            dimension_semantics=dims,
            vmem_limit_bytes=vmem_limit_bytes,
        ),
        cost_estimate=cost,
    )(params, t2d)


def pure_exp_forward(t, log10_base, offset, scale):
    """Apply (10**log10_base)**t + offset, times scale, elementwise via Pallas."""
    orig_shape = t.shape
    orig_dtype = t.dtype

    # Hoist all scalar prep out of the kernel.
    log10_base = jnp.asarray(log10_base, jnp.float32)
    offset = jnp.asarray(offset, jnp.float32)
    scale = jnp.asarray(scale, jnp.float32)
    ln_base = log10_base * jnp.log(jnp.float32(10.0))        # ln(base)
    offset_scaled = offset * scale
    params = jnp.stack([ln_base, scale, offset_scaled])

    def _plain(x):
        x32 = x.astype(jnp.float32)
        return (jnp.exp(x32 * ln_base) * scale + offset_scaled).astype(orig_dtype)

    n = t.size
    if n < _LANE:
        # Tiny tensor / scalar: kernel launch not worth it.
        return _plain(t)

    gen = _tpu_generation()
    max_block_bytes = _MAX_BLOCK_BYTES[gen]
    vmem_limit_bytes = 4 * max_block_bytes + (16 << 20)       # buffers + scratch headroom
    use_two_cores = gen == "v7"
    itemsize = jnp.dtype(orig_dtype).itemsize

    if n % _LANE == 0:
        # Main path: lane-dense [rows, 128] slab. Reshape of a contiguous
        # array is a free bitcast (no extra HBM pass).
        rows = n // _LANE
        target = max(max_block_bytes // (_LANE * itemsize), 1)
        if rows <= target:
            block_rows = rows                                  # single full-extent block
        else:
            block_rows = max((target // 8) * 8, 8)             # big multiple-of-8 tile
        out2d = _run_slab(t.reshape(rows, _LANE), params,
                          block_rows=block_rows,
                          vmem_limit_bytes=vmem_limit_bytes,
                          use_two_cores=use_two_cores)
        return out2d.reshape(orig_shape)

    # Ragged total size (n % 128 != 0): no lane-dense 128-wide view exists
    # without a copy, so keep the original row-major layout as
    # (collapsed leading dims, last dim) with the full last dim as the block's
    # lane extent (always legal). Zero pad / prefix-slice / concatenate passes.
    last = orig_shape[-1] if len(orig_shape) >= 1 else n
    lead = n // last
    row_bytes = last * itemsize
    if row_bytes > max_block_bytes:
        # TODO(synk): tile a huge ragged last dim inside the kernel instead of
        # falling back to plain JAX.
        return _plain(t)
    target = max(max_block_bytes // row_bytes, 1)
    if lead <= target:
        block_rows = lead                                      # full-extent block
    elif target >= 8:
        block_rows = (target // 8) * 8
    else:
        # TODO(synk): ragged total size with near-VMEM-sized rows; plain JAX fallback.
        return _plain(t)
    out2d = _run_slab(t.reshape(lead, last), params,
                      block_rows=block_rows,
                      vmem_limit_bytes=vmem_limit_bytes,
                      use_two_cores=use_two_cores)
    return out2d.reshape(orig_shape)


# Pure-JAX reference for validation (mirrors the PyTorch forward literally).
def _ref_forward(t, log10_base, offset, scale):
    base = 10.0 ** log10_base
    return (base ** t + offset) * scale


if __name__ == "__main__":
    # Deterministic "parameters" (mirrors pure_exp_parameters -> __init__):
    #   base=2.0, offset=-1.0, scale=0.5  -> stored param is log10(base).
    base_init = 2.0
    offset_init = -1.0
    scale_init = 0.5
    log10_base = jnp.log10(jnp.float32(base_init))
    offset = jnp.float32(offset_init)
    scale = jnp.float32(scale_init)

    key = jax.random.PRNGKey(0)
    k0, k1 = jax.random.split(key)

    # Main path: NCHW tensor whose element count is a multiple of 128.
    x = jax.random.uniform(k0, (2, 4, 16, 16), dtype=jnp.float32)
    out = jax.block_until_ready(pure_exp_forward(x, log10_base, offset, scale))
    ref = _ref_forward(x, log10_base, offset, scale)
    assert out.shape == x.shape and out.dtype == x.dtype
    assert jnp.allclose(out, ref, rtol=1e-5, atol=1e-6), "mismatch vs reference (aligned)"

    # Ragged total-size path (2*3*17*17 = 1734 elements): no pad/slice/concat.
    x2 = jax.random.uniform(k1, (2, 3, 17, 17), dtype=jnp.float32)
    out2 = jax.block_until_ready(pure_exp_forward(x2, log10_base, offset, scale))
    ref2 = _ref_forward(x2, log10_base, offset, scale)
    assert out2.shape == x2.shape and out2.dtype == x2.dtype
    assert jnp.allclose(out2, ref2, rtol=1e-5, atol=1e-6), "mismatch vs reference (ragged)"

    print("KERNEL_OK")
</pallas_src>

<mosaic_0001>
module attributes {stable_mosaic.version = 11 : i64} {
  func.func @_pure_exp_kernel(%arg0: i32, %arg1: memref<3xf32, #tpu.memory_space<smem>>, %arg2: memref<16x128xf32, #tpu.memory_space<vmem>>, %arg3: memref<16x128xf32, #tpu.memory_space<vmem>>) attributes {dimension_semantics = [#tpu.dimension_semantics<parallel>], iteration_bounds = array<i64: 1>, scalar_prefetch = 0 : i64, scratch_operands = 0 : i64, tpu.core_type = #tpu.core_type<tc>, window_params = [{transform_indices = @transform_0, window_bounds = array<i64: 3>}, {transform_indices = @transform_1, window_bounds = array<i64: 16, 128>}, {transform_indices = @transform_2, window_bounds = array<i64: 16, 128>}]} {
    %c0 = arith.constant 0 : index
    %0 = memref.load %arg1[%c0] : memref<3xf32, #tpu.memory_space<smem>>
    %c1 = arith.constant 1 : index
    %1 = memref.load %arg1[%c1] : memref<3xf32, #tpu.memory_space<smem>>
    %c2 = arith.constant 2 : index
    %2 = memref.load %arg1[%c2] : memref<3xf32, #tpu.memory_space<smem>>
    %c0_0 = arith.constant 0 : index
    %c0_1 = arith.constant 0 : index
    %3 = vector.load %arg2[%c0_0, %c0_1] : memref<16x128xf32, #tpu.memory_space<vmem>>, vector<16x128xf32>
    %4 = vector.broadcast %0 : f32 to vector<16x128xf32>
    %5 = arith.mulf %3, %4 : vector<16x128xf32>
    %6 = math.exp %5 : vector<16x128xf32>
    %7 = vector.broadcast %1 : f32 to vector<16x128xf32>
    %8 = arith.mulf %6, %7 : vector<16x128xf32>
    %9 = vector.broadcast %2 : f32 to vector<16x128xf32>
    %10 = arith.addf %8, %9 : vector<16x128xf32>
    %c0_2 = arith.constant 0 : index
    %c0_3 = arith.constant 0 : index
    %11 = vector.load %arg3[%c0_2, %c0_3] : memref<16x128xf32, #tpu.memory_space<vmem>>, vector<16x128xf32>
    tpu.vector_store %arg3[%c0_2, %c0_3], %10 {strides = array<i32>} : memref<16x128xf32, #tpu.memory_space<vmem>>, vector<16x128xf32>,
    return
  }
  func.func @transform_0(%arg0: i32) -> i32 {
    %c0_i32 = arith.constant 0 : i32
    %c0_i32_0 = arith.constant 0 : i32
    return %c0_i32 : i32
  }
  func.func @transform_1(%arg0: i32) -> (i32, i32) {
    %c0_i32 = arith.constant 0 : i32
    %c0_i32_0 = arith.constant 0 : i32
    return %arg0, %c0_i32 : i32, i32
  }
  func.func @transform_2(%arg0: i32) -> (i32, i32) {
    %c0_i32 = arith.constant 0 : i32
    %c0_i32_0 = arith.constant 0 : i32
    return %arg0, %c0_i32 : i32, i32
  }
}

</mosaic_0001>

<llo_original>
// kernel: tpu_custom_call.1
$region0: #{tpu_custom_call.1}
  #allocation0 [shape = 'u32[]', space=smem, size = 0x4, offset = 0x4, fixed_abs, tag = 'smem constant byte address 0x4 - core index']
  #allocation1 [shape = 'u32[144,128]{1,0:T(1,128)}', space=vmem, size = 0x12000, scoped, tag = 'internal scratch']
  %s0 = inlined_call_operand.hbm [shape: f32[3], index: 0, kind: input, shape index: {}]
  %s1 = inlined_call_operand.hbm [shape: f32[16,128], index: 1, kind: input, shape index: {}]
  %s2 = inlined_call_operand.hbm [shape: f32[16,128], index: 2, kind: output, shape index: {}]
  %s3 = sld [smem:[#allocation0]]
  $region26: #{tpu_custom_call.1} parent=0
    _
  %s5 = ssub.s32 1, %s3
  %s6 = scalar_select 0, %s5, %s3
  $region1: #{tpu_custom_call.1} parent=0
    #allocation2 [shape = 'u8[512]{0}', space=smem, size = 0x200, scoped, tag = 'input window, operand 0, single buffered']
    #allocation3 [shape = 's32[1]{0}', space=sflag, size = 0x4, scoped, tag = 'scoped memory for tpu_custom_call.1']
    #allocation4 [shape = 's32[1]{0}', space=sflag, size = 0x4, scoped, tag = 'scoped memory for tpu_custom_call.1']
    #allocation5 [shape = 's32[1]{0}', space=sflag, size = 0x4, scoped, tag = 'scoped memory for tpu_custom_call.1']
    #allocation6 [shape = 'u8[8192]{0}', space=vmem, size = 0x2000, scoped, tag = 'input window, operand 1, single buffered']
    #allocation7 [shape = 'u8[8192]{0}', space=vmem, size = 0x2000, scoped, tag = 'output window, operand 0, single buffered']
    %7 = vsyncpa [#allocation5], 0
    %8 = vsyncpa [#allocation3], 0
    %9 = vsyncpa [#allocation4], 0
    // Predicated region
    $region2: #{tpu_custom_call.1} parent=1 // pred_check
      _
    $region3: #{tpu_custom_call.1} parent=1 // pred_check_branch
      %11 = sbr.rel (0) target = $region5
    $region4: #{tpu_custom_call.1} parent=1 // pred_region
      %s13 = ssub.s32 16, 16
      %14 = vsyncadd [#allocation5], %s13
      %17 = dma.hbm_to_smem %s0, 16, [#allocation2], [#allocation5]
    $region5: #{tpu_custom_call.1} parent=1 // pred_fallthru
      _
    // Predicated region
    $region6: #{tpu_custom_call.1} parent=1 // pred_check
      _
    $region7: #{tpu_custom_call.1} parent=1 // pred_check_branch
      %19 = sbr.rel (0) target = $region9
    $region8: #{tpu_custom_call.1} parent=1 // pred_region
      %s21 = ssub.s32 256, 256
      %22 = vsyncadd [#allocation3], %s21
      %s23 = sshll.u32 [#allocation6], 4
      %s24 = int_to_ptr.vmem [resolvable:$true] %s23
      %29 = dma.hbm_to_vmem [thread:$0]  %s1, 256, %s24, [#allocation3], 128, 128, 8
    $region9: #{tpu_custom_call.1} parent=1 // pred_fallthru
      _
    // Predicated region
    $region10: #{tpu_custom_call.1} parent=1 // pred_check
      _
    $region11: #{tpu_custom_call.1} parent=1 // pred_check_branch
      %31 = sbr.rel (0) target = $region13
    $region12: #{tpu_custom_call.1} parent=1 // pred_region
      %32 = dma.done [#allocation5], 16
    $region13: #{tpu_custom_call.1} parent=1 // pred_fallthru
      _
    // Predicated region
    $region14: #{tpu_custom_call.1} parent=1 // pred_check
      _
    $region15: #{tpu_custom_call.1} parent=1 // pred_check_branch
      %34 = sbr.rel (0) target = $region17
    $region16: #{tpu_custom_call.1} parent=1 // pred_region
      %35 = dma.done [#allocation3], 256
    $region17: #{tpu_custom_call.1} parent=1 // pred_fallthru
      _
    %36 = sfence
    %s37 = sld [smem:[#allocation2]]
    %s38 = sld [smem:[#allocation2 + $0x1]]
    %s39 = sld [smem:[#allocation2 + $0x2]]
    %v40 = vld [vmem:[#allocation6] sm:$0xff]
    %v41 = vld [vmem:[#allocation6 + $0x8] sm:$0xff]
    %v42 = vstv %s37
    %v43 = vmul.f32 %v40, %v42
    %v44 = vmul.f32 %v41, %v42
    %v45 = vmul.f32 %v43, 1.442695
    %v46 = vpow.pop %v45
    %v47 = vmul.f32 %v44, 1.442695
    %v48 = vpow.pop %v47
    %v49 = vstv %s38
    %v50 = vmul.f32 %v46, %v49
    %v51 = vmul.f32 %v48, %v49
    %v52 = vstv %s39
    %v53 = vadd.f32 %v50, %v52
    %v54 = vadd.f32 %v51, %v52
    %55 = vst [vmem:[#allocation7] sm:$0xff] %v53
    %56 = vst [vmem:[#allocation7 + $0x8] sm:$0xff] %v54
    // Predicated region
    $region18: #{tpu_custom_call.1} parent=1 // pred_check
      _
    $region19: #{tpu_custom_call.1} parent=1 // pred_check_branch
      %58 = sbr.rel (0) target = $region21
    $region20: #{tpu_custom_call.1} parent=1 // pred_region
      %s60 = ssub.s32 256, 256
      %61 = vsyncadd [#allocation4], %s60
      %s62 = sshll.u32 [#allocation7], 4
      %s63 = int_to_ptr.vmem [resolvable:$true] %s62
      %68 = dma.vmem_to_hbm [thread:$0]  %s63, 256, %s2, [#allocation4], 128, 128, 8
    $region21: #{tpu_custom_call.1} parent=1 // pred_fallthru
      _
    // Predicated region
    $region22: #{tpu_custom_call.1} parent=1 // pred_check
      _
    $region23: #{tpu_custom_call.1} parent=1 // pred_check_branch
      %70 = sbr.rel (0) target = $region25
    $region24: #{tpu_custom_call.1} parent=1 // pred_region
      %71 = dma.done [#allocation4], 256
    $region25: #{tpu_custom_call.1} parent=1 // pred_fallthru
      _
    %72 = vsyncpa [#allocation3], 1
    %73 = vsyncpa [#allocation4], 1
    %74 = vsyncpa [#allocation5], 1

</llo_original>
